<compile_context>
chip_gen: v5e
topology: v5e:2x2
jax: 0.10.0
libtpu: 0.0.40
codegen_flags: <defaults>
</compile_context>

<pallas_src>
import functools

import jax
import jax.numpy as jnp
import numpy as np
from jax.experimental import pallas as pl
from jax.experimental.pallas import tpu as pltpu


def _round_up(x, m):
    return ((x + m - 1) // m) * m


# ---------------------------------------------------------------------------
# Pre-pass: L2-normalize the node table once (matches F.normalize(p=2, dim=-1))
# with the bf16 cast fused into the same kernel.
# ---------------------------------------------------------------------------
def _normalize_kernel(x_ref, o_ref):
    x = x_ref[...].astype(jnp.float32)
    ss = jnp.sum(x * x, axis=-1, keepdims=True)
    # x / max(||x||, 1e-12)  ==  x * rsqrt(max(||x||^2, 1e-24))
    o_ref[...] = (x * jax.lax.rsqrt(jnp.maximum(ss, 1e-24))).astype(o_ref.dtype)


def _normalize_table(x, tile_n=1024, out_dtype=jnp.bfloat16):
    n, d = x.shape
    tn = min(int(tile_n), _round_up(n, 8))
    n_pad = _round_up(n, tn)
    if n_pad != n:
        x = jnp.pad(x, ((0, n_pad - n), (0, 0)))   # zero rows normalize to 0
    y = pl.pallas_call(
        _normalize_kernel,
        out_shape=jax.ShapeDtypeStruct((n_pad, d), out_dtype),
        grid=(n_pad // tn,),
        in_specs=[pl.BlockSpec((tn, d), lambda i: (i, 0))],
        out_specs=pl.BlockSpec((tn, d), lambda i: (i, 0)),
        compiler_params=pltpu.CompilerParams(
            dimension_semantics=("parallel",)),
    )(x)
    return y[:n] if n_pad != n else y


# ---------------------------------------------------------------------------
# Main kernel: per-edge label-0 cross entropy over K+1 candidate logits,
# tiled over edges.
# ---------------------------------------------------------------------------
def _contrastive_kernel(src_ref, cand_ref, out_ref, acc_ref, *,
                        temperature, e_total, tile_e, tiles_per_split):
    c = pl.program_id(0)            # split (trivial unless nsplit > 1)
    i = pl.program_id(1)            # edge-tile within this split (arbitrary)

    @pl.when(i == 0)
    def _init():
        acc_ref[...] = jnp.zeros_like(acc_ref)

    src = src_ref[...].astype(jnp.float32)        # [TE, D]    pre-normalized
    cand = cand_ref[...].astype(jnp.float32)      # [K+1, TE, D] candidate-major

    inv_t = 1.0 / temperature
    # Per-edge, per-candidate cosine logits: contraction over D on the VPU,
    # result is lane-dense over edges ([K+1 sublanes, TE lanes]).
    logits = jnp.sum(cand * src[None, :, :], axis=-1) * inv_t     # [K+1, TE]

    # label-0 cross entropy with a numerically-stable logsumexp over the
    # K+1 candidate axis (max is over the selected logits only -> no overflow).
    pos = logits[0:1, :]                                          # [1, TE]
    m = jnp.max(logits, axis=0, keepdims=True)                    # [1, TE]
    sumexp = jnp.sum(jnp.exp(logits - m), axis=0, keepdims=True)  # [1, TE]
    per_edge = m + jnp.log(sumexp) - pos                          # [1, TE]

    # Mask edges past the true E (zero padding / ragged last tile).
    row0 = (c * tiles_per_split + i) * tile_e
    eid = row0 + jax.lax.broadcasted_iota(jnp.int32, (1, tile_e), 1)
    per_edge = jnp.where(eid < e_total, per_edge, 0.0)

    # Lane-dense accumulation: no cross-lane reduce per tile.
    acc_ref[...] += per_edge

    @pl.when(i == tiles_per_split - 1)
    def _finalize():
        # This split's contribution to the mean; wrapper sums over splits.
        val = jnp.sum(acc_ref[...]) * (1.0 / e_total)
        out_ref[...] = jnp.zeros_like(out_ref) + val


def contrastive_loss(node_embeddings, edge_index, neg_indices,
                     temperature=0.5, tile_e=512, nsplit=1):
    """Pallas implementation of ContrastiveLoss.forward.

    node_embeddings: [N, D] float32
    edge_index:      [2, E] int32
    neg_indices:     [E, K] int32  (the torch.randint draw, made explicit)
    """
    n, d = node_embeddings.shape
    e = edge_index.shape[1]
    k = neg_indices.shape[1]
    kp1 = k + 1

    # 1) Normalize the node table once (Pallas pre-pass, fused bf16 cast).
    table_n = _normalize_table(node_embeddings)                  # [N, D] bf16

    # 2) Gather src rows and the K+1 candidate rows (dst first, then the K
    #    negatives) in candidate-major layout so in-kernel logits/softmax
    #    temporaries are lane-dense over edges.
    src_emb = table_n[edge_index[0]]                             # [E, D]
    cand_idx = jnp.concatenate(
        [edge_index[1][None, :].astype(jnp.int32),
         jnp.transpose(neg_indices).astype(jnp.int32)], axis=0)  # [K+1, E]
    cand_emb = table_n[cand_idx]                                 # [K+1, E, D]

    # 3) Tile E across (nsplit "parallel") x (tiles_per_split "arbitrary").
    te = _round_up(
        min(int(tile_e), _round_up(max(pl.cdiv(e, nsplit), 1), 8)), 8)
    tiles = _round_up(pl.cdiv(e, te), nsplit)
    tiles_per_split = tiles // nsplit
    e_pad = tiles * te
    if e_pad != e:
        pad = e_pad - e
        src_emb = jnp.pad(src_emb, ((0, pad), (0, 0)))
        cand_emb = jnp.pad(cand_emb, ((0, 0), (0, pad), (0, 0)))

    kernel = functools.partial(
        _contrastive_kernel, temperature=float(temperature), e_total=e,
        tile_e=te, tiles_per_split=tiles_per_split)

    out = pl.pallas_call(
        kernel,
        out_shape=jax.ShapeDtypeStruct((nsplit, 8, 128), jnp.float32),
        grid_spec=pltpu.PrefetchScalarGridSpec(
            num_scalar_prefetch=0,
            grid=(nsplit, tiles_per_split),
            in_specs=[
                # (TE, D) block of pre-gathered, pre-normalized src rows (bf16)
                pl.BlockSpec((te, d),
                             lambda c, i: (c * tiles_per_split + i, 0)),
                # (K+1, TE, D) block of candidate rows (dst + negatives, bf16)
                pl.BlockSpec((kp1, te, d),
                             lambda c, i: (0, c * tiles_per_split + i, 0)),
            ],
            out_specs=pl.BlockSpec((1, 8, 128), lambda c, i: (c, 0, 0)),
            scratch_shapes=[pltpu.VMEM((1, te), jnp.float32)],
        ),
        compiler_params=pltpu.CompilerParams(
            dimension_semantics=("parallel", "arbitrary"),
            # 2x double-buffered bf16 inputs (~3 MB at TE=512) + f32 kernel
            # temporaries (~10 MB worst case) << 32 MiB; valid on v5e/v6e/v7x.
            vmem_limit_bytes=32 * 1024 * 1024),
    )(src_emb, cand_emb)

    return jnp.sum(out[:, 0, 0])


# ---------------------------------------------------------------------------
# Ground-truth reference in numpy float64 (mirrors the PyTorch forward).
# ---------------------------------------------------------------------------
def reference_loss_np(node_embeddings, edge_index, neg_indices, temperature=0.5):
    x = np.asarray(node_embeddings, dtype=np.float64)
    x = x / np.maximum(np.linalg.norm(x, axis=-1, keepdims=True), 1e-12)
    src = np.asarray(edge_index[0])
    dst = np.asarray(edge_index[1])
    neg = np.asarray(neg_indices)
    pos_sim = np.sum(x[src] * x[dst], axis=-1)                      # [E]
    neg_sim = np.einsum("ed,ekd->ek", x[src], x[neg])               # [E, K]
    logits = np.concatenate([pos_sim[:, None], neg_sim], axis=1) / temperature
    m = logits.max(axis=1, keepdims=True)
    lse = m[:, 0] + np.log(np.sum(np.exp(logits - m), axis=1))
    return float(np.mean(lse - logits[:, 0]))                       # labels == 0


if __name__ == "__main__":
    key = jax.random.PRNGKey(0)

    # --- Test 1: small shapes consistent with the module defaults ----------
    k_emb, k_src, k_dst, k_neg = jax.random.split(key, 4)
    N, D, E, K = 16, 32, 8, 10                     # num_neg_samples default 10
    temperature = 0.5                              # module default

    node_embeddings = jax.random.normal(k_emb, (N, D), dtype=jnp.float32)
    src = jax.random.randint(k_src, (E,), 0, N, dtype=jnp.int32)
    dst = jax.random.randint(k_dst, (E,), 0, N, dtype=jnp.int32)
    edge_index = jnp.stack([src, dst], axis=0)                  # [2, E]
    neg_indices = jax.random.randint(k_neg, (E, K), 0, N, dtype=jnp.int32)

    loss = jax.block_until_ready(
        contrastive_loss(node_embeddings, edge_index, neg_indices, temperature))
    ref = reference_loss_np(node_embeddings, edge_index, neg_indices, temperature)
    # bf16 table storage (f32 accumulation in-kernel) -> ~1e-3 level error.
    np.testing.assert_allclose(np.asarray(loss), ref, rtol=1e-2, atol=1e-2)

    # --- Test 2: multiple edge tiles + ragged tail + split axis ------------
    k_emb2, k_src2, k_dst2, k_neg2 = jax.random.split(jax.random.PRNGKey(1), 4)
    N2, D2, E2, K2 = 100, 32, 300, 10
    node_embeddings2 = jax.random.normal(k_emb2, (N2, D2), dtype=jnp.float32)
    src2 = jax.random.randint(k_src2, (E2,), 0, N2, dtype=jnp.int32)
    dst2 = jax.random.randint(k_dst2, (E2,), 0, N2, dtype=jnp.int32)
    edge_index2 = jnp.stack([src2, dst2], axis=0)
    neg_indices2 = jax.random.randint(k_neg2, (E2, K2), 0, N2, dtype=jnp.int32)

    loss2 = jax.block_until_ready(
        contrastive_loss(node_embeddings2, edge_index2, neg_indices2,
                         temperature, tile_e=128, nsplit=2))
    ref2 = reference_loss_np(node_embeddings2, edge_index2, neg_indices2,
                             temperature)
    np.testing.assert_allclose(np.asarray(loss2), ref2, rtol=1e-2, atol=1e-2)

    print("KERNEL_OK")
</pallas_src>

<mosaic_0001>
module attributes {stable_mosaic.version = 11 : i64} {
  func.func @_normalize_kernel(%arg0: i32, %arg1: memref<16x32xf32, #tpu.memory_space<vmem>>, %arg2: memref<16x32xbf16, #tpu.memory_space<vmem>>) attributes {dimension_semantics = [#tpu.dimension_semantics<parallel>], iteration_bounds = array<i64: 1>, scalar_prefetch = 0 : i64, scratch_operands = 0 : i64, tpu.core_type = #tpu.core_type<tc>, window_params = [{transform_indices = @transform_0, window_bounds = array<i64: 16, 32>}, {transform_indices = @transform_1, window_bounds = array<i64: 16, 32>}]} {
    %c0 = arith.constant 0 : index
    %c0_0 = arith.constant 0 : index
    %0 = vector.load %arg1[%c0, %c0_0] : memref<16x32xf32, #tpu.memory_space<vmem>>, vector<16x32xf32>
    %1 = arith.mulf %0, %0 : vector<16x32xf32>
    %cst = arith.constant dense<0.000000e+00> : vector<16xf32>
    %2 = vector.multi_reduction <add>, %1, %cst [1] : vector<16x32xf32> to vector<16xf32>
    %3 = vector.shape_cast %2 : vector<16xf32> to vector<16x1xf32>
    %cst_1 = arith.constant 1.000000e-24 : f32
    %4 = vector.broadcast %cst_1 : f32 to vector<16x1xf32>
    %5 = arith.maximumf %3, %4 : vector<16x1xf32>
    %6 = math.rsqrt %5 : vector<16x1xf32>
    %7 = vector.broadcast %6 : vector<16x1xf32> to vector<16x32xf32>
    %8 = arith.mulf %0, %7 : vector<16x32xf32>
    %9 = arith.truncf %8 : vector<16x32xf32> to vector<16x32xbf16>
    %c0_2 = arith.constant 0 : index
    %c0_3 = arith.constant 0 : index
    %10 = vector.load %arg2[%c0_2, %c0_3] : memref<16x32xbf16, #tpu.memory_space<vmem>>, vector<16x32xbf16>
    tpu.vector_store %arg2[%c0_2, %c0_3], %9 {strides = array<i32>} : memref<16x32xbf16, #tpu.memory_space<vmem>>, vector<16x32xbf16>,
    return
  }
  func.func @transform_0(%arg0: i32) -> (i32, i32) {
    %c0_i32 = arith.constant 0 : i32
    %c0_i32_0 = arith.constant 0 : i32
    return %arg0, %c0_i32 : i32, i32
  }
  func.func @transform_1(%arg0: i32) -> (i32, i32) {
    %c0_i32 = arith.constant 0 : i32
    %c0_i32_0 = arith.constant 0 : i32
    return %arg0, %c0_i32 : i32, i32
  }
}

</mosaic_0001>

<llo_original>
// kernel: tpu_custom_call.1
$region0: #{tpu_custom_call.1}
  #allocation0 [shape = 'u32[]', space=smem, size = 0x4, offset = 0x4, fixed_abs, tag = 'smem constant byte address 0x4 - core index']
  #allocation1 [shape = 'u32[72,128]{1,0:T(1,128)}', space=vmem, size = 0x9000, scoped, tag = 'internal scratch']
  %s0 = inlined_call_operand.hbm [shape: f32[16,32], index: 0, kind: input, shape index: {}]
  %s1 = inlined_call_operand.hbm [shape: bf16[16,32], index: 1, kind: output, shape index: {}]
  %s2 = sld [smem:[#allocation0]]
  $region18: #{tpu_custom_call.1} parent=0
    _
  %s4 = ssub.s32 1, %s2
  %s5 = scalar_select 0, %s4, %s2
  $region1: #{tpu_custom_call.1} parent=0
    #allocation2 [shape = 'u8[8192]{0}', space=vmem, size = 0x2000, scoped, tag = 'input window, operand 0, single buffered']
    #allocation3 [shape = 's32[1]{0}', space=sflag, size = 0x4, scoped, tag = 'scoped memory for tpu_custom_call.1']
    #allocation4 [shape = 's32[1]{0}', space=sflag, size = 0x4, scoped, tag = 'scoped memory for tpu_custom_call.1']
    #allocation5 [shape = 'u8[4096]{0}', space=vmem, size = 0x1000, scoped, tag = 'output window, operand 0, single buffered']
    %6 = vsyncpa [#allocation3], 0
    %7 = vsyncpa [#allocation4], 0
    // Predicated region
    $region2: #{tpu_custom_call.1} parent=1 // pred_check
      _
    $region3: #{tpu_custom_call.1} parent=1 // pred_check_branch
      %9 = sbr.rel (0) target = $region5
    $region4: #{tpu_custom_call.1} parent=1 // pred_region
      %11 = vsyncadd [#allocation3], 0
      %s12 = sshll.u32 %s0, 4
      %s13 = int_to_ptr.hbm [resolvable:$true] %s12
      %s14 = sshll.u32 [#allocation2], 4
      %s15 = int_to_ptr.vmem [resolvable:$true] %s14
      %20 = dma.hbm_to_vmem [thread:$0]  %s13, 256, %s15, [#allocation3], 128, 128, 8
    $region5: #{tpu_custom_call.1} parent=1 // pred_fallthru
      _
    // Predicated region
    $region6: #{tpu_custom_call.1} parent=1 // pred_check
      _
    $region7: #{tpu_custom_call.1} parent=1 // pred_check_branch
      %22 = sbr.rel (0) target = $region9
    $region8: #{tpu_custom_call.1} parent=1 // pred_region
      %24 = dma.done [#allocation3], 256
    $region9: #{tpu_custom_call.1} parent=1 // pred_fallthru
      _
    %v25 = vld [vmem:[#allocation2] sm:$0xff]
    %v26 = vld [vmem:[#allocation2 + $0x8] sm:$0xff]
    %v27 = vmul.f32 %v25, %v25
    %v28 = vmul.f32 %v26, %v26
    %vm29 = vcmask 261120
    %v30 = vsel %vm29, %v27, 0.0
    %31 = vadd.xlane.f32.xlu0 %v30
    %v32 = vpop.xlane.xlu0 %31
    %v33 = vsel %vm29, %v28, 0.0
    %34 = vadd.xlane.f32.xlu0 %v33
    %v35 = vpop.xlane.xlu0 %34
    %v36 = vmax.f32 %v32, 1e-24
    %v37 = vmax.f32 %v35, 1e-24
    %v38 = vrsqrt.pop %v36
    %v39 = vmul.f32 %v38, %v36
    %v40 = vmul.f32 %v39, %v38
    %v41 = vmul.f32 0.5, %v40
    %v42 = vsub.f32 1.5, %v41
    %v43 = vmul.f32 %v38, %v42
    %vm44 = vweird.f32 %v36
    %vm45 = vweird.f32 %v38
    %vm46 = vmor %vm44, %vm45
    %v47 = vsel %vm46, %v38, %v43
    %v48 = vrsqrt.pop %v37
    %v49 = vmul.f32 %v48, %v37
    %v50 = vmul.f32 %v49, %v48
    %v51 = vmul.f32 0.5, %v50
    %v52 = vsub.f32 1.5, %v51
    %v53 = vmul.f32 %v48, %v52
    %vm54 = vweird.f32 %v37
    %vm55 = vweird.f32 %v48
    %vm56 = vmor %vm54, %vm55
    %v57 = vsel %vm56, %v48, %v53
    %v58 = vmul.f32 %v25, %v47
    %v59 = vmul.f32 %v26, %v57
    %v60 = vpack.c.bf16 %v58, %v58
    %v61 = vpack.c.bf16 %v59, %v59
    %vm62 = vcmask 257024
    %63 = vst.msk [vmem:[#allocation5] sm:$0xf] %vm62, %v60
    %64 = vst.msk [vmem:[#allocation5 + $0x4] sm:$0xf] %vm62, %v61
    // Predicated region
    $region10: #{tpu_custom_call.1} parent=1 // pred_check
      _
    $region11: #{tpu_custom_call.1} parent=1 // pred_check_branch
      %66 = sbr.rel (0) target = $region13
    $region12: #{tpu_custom_call.1} parent=1 // pred_region
      %68 = vsyncadd [#allocation4], 0
      %s69 = sshll.u32 [#allocation5], 4
      %s70 = int_to_ptr.vmem [resolvable:$true] %s69
      %s71 = sshll.u32 %s1, 4
      %s72 = int_to_ptr.hbm [resolvable:$true] %s71
      %77 = dma.vmem_to_hbm [thread:$0]  %s70, 128, %s72, [#allocation4], 64, 64, 4
    $region13: #{tpu_custom_call.1} parent=1 // pred_fallthru
      _
    // Predicated region
    $region14: #{tpu_custom_call.1} parent=1 // pred_check
      _
    $region15: #{tpu_custom_call.1} parent=1 // pred_check_branch
      %79 = sbr.rel (0) target = $region17
    $region16: #{tpu_custom_call.1} parent=1 // pred_region
      %81 = dma.done [#allocation4], 128
    $region17: #{tpu_custom_call.1} parent=1 // pred_fallthru
      _
    %82 = vsyncpa [#allocation3], 1
    %83 = vsyncpa [#allocation4], 1

</llo_original>
